<compile_context>
chip_gen: v6e
topology: v6e:2x2x1
jax: 0.10.0
libtpu: 0.0.40
codegen_flags: <defaults>
</compile_context>

<pallas_src>
import jax
import jax.numpy as jnp
import numpy as np
from jax.experimental import pallas as pl
from jax.experimental.pallas import tpu as pltpu


def _cdiv(a, b):
    return -(-a // b)


def _round_up(x, m):
    return _cdiv(x, m) * m


def _sublane_group(dtype):
    # rows per sublane tile for this dtype: 8 (4-byte), 16 (2-byte), 32 (1-byte)
    return max(8, 32 // jnp.dtype(dtype).itemsize)


def _vmem_budget():
    """(tile budget bytes, vmem_limit_bytes) gated on the chip generation."""
    try:
        cap = int(getattr(pltpu.get_tpu_info(), "vmem_capacity_bytes",
                          64 * 1024 * 1024))
    except Exception:                       # unknown chip: stay v7x-safe
        cap = 64 * 1024 * 1024
    if cap <= 64 * 1024 * 1024:             # v7x-class: 64 MiB physical
        return 24 * 1024 * 1024, 32 * 1024 * 1024
    return 64 * 1024 * 1024, 80 * 1024 * 1024   # v5e / v6e: 128 MiB physical


def _choose_block_rows(H, W, p_dtype, t_dtype, acc_lanes, budget, max_rows):
    """Largest legal H-tile TH keeping the double-buffered pipeline in budget."""
    g = max(_sublane_group(p_dtype), _sublane_group(t_dtype))
    lanes_in = _round_up(W, 128)                       # padded lane footprint
    lanes_acc = _round_up(min(W, acc_lanes), 128)
    # VMEM bytes per block row: 2x double-buffered inputs + 3 f32 accumulators
    # (output blocks + DMA semaphores are covered by the 8 MiB limit headroom).
    per_row = (2 * lanes_in * (jnp.dtype(p_dtype).itemsize
                               + jnp.dtype(t_dtype).itemsize)
               + 3 * lanes_acc * 4)

    def legal(th):
        th = max(1, min(int(th), H))
        if th >= H:
            return H                       # full-extent block is always legal
        if th < g:
            return min(g, H)
        return (th // g) * g               # multiple of the sublane group

    th = legal(budget // per_row)
    if max_rows is not None:
        th = legal(min(th, max_rows))
    return th


def _make_dice_partials_kernel(H, th, W, cb):
    """Grid = (N, C, n_h_tiles); axis 2 is the streaming reduction axis."""
    n_full = W // cb
    rem = W - n_full * cb
    ragged_rows = (H % th) != 0

    def kernel(p_ref, t_ref, o_ref, num_acc, sp_acc, st_acc):
        hb = pl.program_id(2)

        @pl.when(hb == 0)
        def _init():
            num_acc[...] = jnp.zeros_like(num_acc)
            sp_acc[...] = jnp.zeros_like(sp_acc)
            st_acc[...] = jnp.zeros_like(st_acc)

        if ragged_rows:
            rows = jax.lax.broadcasted_iota(jnp.int32, (th, cb), 0) + hb * th
            rmask = rows < H                         # valid source rows
        else:
            rmask = None

        def accumulate(col0, width):
            sl = slice(col0, col0 + width)           # static slice -> free view
            ps = jax.nn.sigmoid(p_ref[:, sl].astype(jnp.float32))
            tv = t_ref[:, sl].astype(jnp.float32)
            if rmask is not None:
                m = rmask[:, :width]
                ps = jnp.where(m, ps, 0.0)           # also kills garbage rows
                tv = jnp.where(m, tv, 0.0)
            num_acc[:, :width] += ps * tv
            sp_acc[:, :width] += ps
            st_acc[:, :width] += tv

        for j in range(n_full):
            accumulate(j * cb, cb)
        if rem:
            accumulate(n_full * cb, rem)

        @pl.when(hb == pl.num_programs(2) - 1)
        def _finalize():
            num = jnp.sum(num_acc[...], keepdims=True)    # (1, 1)
            sp = jnp.sum(sp_acc[...], keepdims=True)
            st = jnp.sum(st_acc[...], keepdims=True)
            lane = jax.lax.broadcasted_iota(jnp.int32, (8, 128), 1)
            row0 = jax.lax.broadcasted_iota(jnp.int32, (8, 128), 0) == 0
            o_ref[...] = (jnp.where(row0 & (lane == 0), num, 0.0)
                          + jnp.where(row0 & (lane == 1), sp, 0.0)
                          + jnp.where(row0 & (lane == 2), st, 0.0))

    return kernel


def dice_loss_4mots(predict, target, *, num_classes=3, ignore_index=None,
                    weight=None, smooth=1.0,
                    _max_block_rows=None, _acc_lanes=512):
    """Pallas-backed equivalent of DiceLoss4MOTS.forward (weight=None path)."""
    assert predict.shape == target.shape, "predict & target shape mismatch"
    N, C, H, W = predict.shape
    assert C == num_classes, f"expected {num_classes} channels, got {C}"
    if weight is not None:
        # TODO(synk): weight path not implemented (the PyTorch source reads self.weights, which does not exist, so weight!=None crashes there too).
        raise NotImplementedError("weight is not supported")

    budget, vmem_limit = _vmem_budget()
    th = _choose_block_rows(H, W, predict.dtype, target.dtype,
                            _acc_lanes, budget, _max_block_rows)
    cb = min(W, _acc_lanes)
    nh = _cdiv(H, th)

    kernel = _make_dice_partials_kernel(H, th, W, cb)
    slab = pl.pallas_call(
        kernel,
        out_shape=jax.ShapeDtypeStruct((N, C, 8, 128), jnp.float32),
        grid_spec=pltpu.PrefetchScalarGridSpec(
            num_scalar_prefetch=0,
            grid=(N, C, nh),
            in_specs=[
                pl.BlockSpec((None, None, th, W), lambda n, c, h: (n, c, h, 0)),
                pl.BlockSpec((None, None, th, W), lambda n, c, h: (n, c, h, 0)),
            ],
            out_specs=pl.BlockSpec((None, None, 8, 128),
                                   lambda n, c, h: (n, c, 0, 0)),
            scratch_shapes=[pltpu.VMEM((th, cb), jnp.float32)] * 3,
        ),
        compiler_params=pltpu.CompilerParams(
            dimension_semantics=("parallel", "parallel", "arbitrary"),
            vmem_limit_bytes=vmem_limit,
        ),
    )(predict, target)

    num = slab[:, :, 0, 0]                 # sum(sigmoid(p) * t) per (n, c)
    sum_p = slab[:, :, 0, 1]               # sum(sigmoid(p))
    sum_t = slab[:, :, 0, 2]               # sum(t)

    # BinaryDiceLoss: dice = 1 - 2*num / (sum_p + sum_t + smooth)
    # (smooth in the denominator only, exactly as in the PyTorch source).
    dice = 1.0 - 2.0 * num / (sum_p + sum_t + float(smooth))          # (N, C)

    # validity probe = first flattened target element per (n, c); tiny JAX gather
    first_t = target[:, :, 0, 0].astype(jnp.float32)
    valid = first_t != -1.0
    cnt = jnp.sum(valid.astype(jnp.float32), axis=0)                  # (C,)
    class_loss = jnp.sum(jnp.where(valid, dice, 0.0), axis=0) / cnt   # NaN if cnt==0

    # static class selection (mirrors `if i != self.ignore_index`)
    keep = [i for i in range(num_classes) if i != ignore_index]
    class_loss = class_loss[jnp.asarray(keep, dtype=jnp.int32)]

    # total_loss[total_loss == total_loss] -> drop NaN classes, then mean
    finite = jnp.logical_not(jnp.isnan(class_loss))
    return (jnp.sum(jnp.where(finite, class_loss, 0.0))
            / jnp.sum(finite.astype(jnp.float32)))


def _reference_dice_loss_4mots(predict, target, *, num_classes=3,
                               ignore_index=None, smooth=1.0):
    """Pure-JAX transcription of the PyTorch forward, for verification."""
    p = jax.nn.sigmoid(predict.astype(jnp.float32))
    losses = []
    for i in range(num_classes):
        if i == ignore_index:
            continue
        pi = p[:, i].reshape(p.shape[0], -1)
        ti = target[:, i].reshape(target.shape[0], -1).astype(jnp.float32)
        num = jnp.sum(pi * ti, axis=1)
        den = jnp.sum(pi, axis=1) + jnp.sum(ti, axis=1) + smooth
        dl = 1.0 - 2.0 * num / den
        mask = ti[:, 0] != -1
        losses.append(jnp.sum(jnp.where(mask, dl, 0.0))
                      / jnp.sum(mask.astype(jnp.float32)))
    tl = jnp.stack(losses)
    finite = jnp.logical_not(jnp.isnan(tl))
    return (jnp.sum(jnp.where(finite, tl, 0.0))
            / jnp.sum(finite.astype(jnp.float32)))


if __name__ == "__main__":
    key = jax.random.PRNGKey(0)
    k1, k2, k3, k4 = jax.random.split(key, 4)

    # Case 1: module-default shape, f32, with a partially-annotated class and a
    # fully un-annotated class (exercises the -1 mask + NaN-filter path).
    N, C, H, W = 2, 3, 16, 16
    predict = jax.random.normal(k1, (N, C, H, W), dtype=jnp.float32)
    target = jax.random.bernoulli(k2, 0.4, (N, C, H, W)).astype(jnp.float32)
    target = target.at[1, 1].set(-1.0)
    target = target.at[:, 2].set(-1.0)

    out = jax.block_until_ready(dice_loss_4mots(predict, target, num_classes=C))
    ref = jax.block_until_ready(
        _reference_dice_loss_4mots(predict, target, num_classes=C))
    assert np.allclose(np.asarray(out), np.asarray(ref),
                       rtol=1e-4, atol=1e-4, equal_nan=True), (out, ref)

    # Case 2: bf16 inputs (the HBM-traffic-halving path; kernel accumulates f32).
    p_bf = predict.astype(jnp.bfloat16)
    t_bf = target.astype(jnp.bfloat16)
    out_bf = jax.block_until_ready(dice_loss_4mots(p_bf, t_bf, num_classes=C))
    ref_bf = jax.block_until_ready(
        _reference_dice_loss_4mots(p_bf, t_bf, num_classes=C))
    assert np.allclose(np.asarray(out_bf), np.asarray(ref_bf),
                       rtol=1e-3, atol=1e-3, equal_nan=True), (out_bf, ref_bf)

    # Case 3: ragged H tiling + column-chunked accumulation + multi-step grid
    # (force small row tiles / accumulator width through the test knobs).
    N2, C2, H2, W2 = 2, 3, 24, 640
    p2 = jax.random.normal(k3, (N2, C2, H2, W2), dtype=jnp.float32)
    t2 = jax.random.bernoulli(k4, 0.3, (N2, C2, H2, W2)).astype(jnp.float32)
    t2 = t2.at[0, 0].set(-1.0)
    out2 = jax.block_until_ready(
        dice_loss_4mots(p2, t2, num_classes=C2,
                        _max_block_rows=16, _acc_lanes=256))
    ref2 = jax.block_until_ready(
        _reference_dice_loss_4mots(p2, t2, num_classes=C2))
    assert np.allclose(np.asarray(out2), np.asarray(ref2),
                       rtol=1e-4, atol=1e-4, equal_nan=True), (out2, ref2)

    print("KERNEL_OK")
</pallas_src>

<mosaic_0001>
module attributes {stable_mosaic.version = 11 : i64} {
  func.func @kernel(%arg0: i32, %arg1: i32, %arg2: i32, %arg3: memref<1x1x16x16xf32, #tpu.memory_space<vmem>>, %arg4: memref<1x1x16x16xf32, #tpu.memory_space<vmem>>, %arg5: memref<1x1x8x128xf32, #tpu.memory_space<vmem>>, %arg6: memref<16x16xf32, #tpu.memory_space<vmem>>, %arg7: memref<16x16xf32, #tpu.memory_space<vmem>>, %arg8: memref<16x16xf32, #tpu.memory_space<vmem>>) attributes {dimension_semantics = [#tpu.dimension_semantics<parallel>, #tpu.dimension_semantics<parallel>, #tpu.dimension_semantics<arbitrary>], iteration_bounds = array<i64: 2, 3, 1>, scalar_prefetch = 0 : i64, scratch_operands = 3 : i64, tpu.core_type = #tpu.core_type<tc>, window_params = [{transform_indices = @transform_0, window_bounds = array<i64: 1, 1, 16, 16>}, {transform_indices = @transform_1, window_bounds = array<i64: 1, 1, 16, 16>}, {transform_indices = @transform_2, window_bounds = array<i64: 1, 1, 8, 128>}]} {
    %c0_i32 = arith.constant 0 : i32
    %0 = arith.cmpi eq, %arg2, %c0_i32 : i32
    %1 = arith.extui %0 : i1 to i32
    %c0_i32_0 = arith.constant 0 : i32
    %2 = arith.cmpi ne, %1, %c0_i32_0 : i32
    scf.if %2 {
      %cst_22 = arith.constant 0.000000e+00 : f32
      %25 = vector.broadcast %cst_22 : f32 to vector<16x16xf32>
      %c0_23 = arith.constant 0 : index
      %c0_24 = arith.constant 0 : index
      %26 = vector.load %arg6[%c0_23, %c0_24] : memref<16x16xf32, #tpu.memory_space<vmem>>, vector<16x16xf32>
      tpu.vector_store %arg6[%c0_23, %c0_24], %25 {strides = array<i32>} : memref<16x16xf32, #tpu.memory_space<vmem>>, vector<16x16xf32>,
      %cst_25 = arith.constant 0.000000e+00 : f32
      %27 = vector.broadcast %cst_25 : f32 to vector<16x16xf32>
      %c0_26 = arith.constant 0 : index
      %c0_27 = arith.constant 0 : index
      %28 = vector.load %arg7[%c0_26, %c0_27] : memref<16x16xf32, #tpu.memory_space<vmem>>, vector<16x16xf32>
      tpu.vector_store %arg7[%c0_26, %c0_27], %27 {strides = array<i32>} : memref<16x16xf32, #tpu.memory_space<vmem>>, vector<16x16xf32>,
      %cst_28 = arith.constant 0.000000e+00 : f32
      %29 = vector.broadcast %cst_28 : f32 to vector<16x16xf32>
      %c0_29 = arith.constant 0 : index
      %c0_30 = arith.constant 0 : index
      %30 = vector.load %arg8[%c0_29, %c0_30] : memref<16x16xf32, #tpu.memory_space<vmem>>, vector<16x16xf32>
      tpu.vector_store %arg8[%c0_29, %c0_30], %29 {strides = array<i32>} : memref<16x16xf32, #tpu.memory_space<vmem>>, vector<16x16xf32>,
    } else {
    }
    %c0 = arith.constant 0 : index
    %c0_1 = arith.constant 0 : index
    %c0_2 = arith.constant 0 : index
    %c0_3 = arith.constant 0 : index
    %3 = vector.load %arg3[%c0, %c0_1, %c0_2, %c0_3] : memref<1x1x16x16xf32, #tpu.memory_space<vmem>>, vector<1x1x16x16xf32>
    %4 = vector.shape_cast %3 : vector<1x1x16x16xf32> to vector<16x16xf32>
    %5 = arith.negf %4 : vector<16x16xf32>
    %6 = math.exp %5 : vector<16x16xf32>
    %cst = arith.constant 1.000000e+00 : f32
    %7 = vector.broadcast %cst : f32 to vector<16x16xf32>
    %8 = arith.addf %7, %6 : vector<16x16xf32>
    %9 = arith.divf %7, %8 : vector<16x16xf32>
    %c0_4 = arith.constant 0 : index
    %c0_5 = arith.constant 0 : index
    %c0_6 = arith.constant 0 : index
    %c0_7 = arith.constant 0 : index
    %10 = vector.load %arg4[%c0_4, %c0_5, %c0_6, %c0_7] : memref<1x1x16x16xf32, #tpu.memory_space<vmem>>, vector<1x1x16x16xf32>
    %11 = vector.shape_cast %10 : vector<1x1x16x16xf32> to vector<16x16xf32>
    %c0_8 = arith.constant 0 : index
    %c0_9 = arith.constant 0 : index
    %12 = vector.load %arg6[%c0_8, %c0_9] : memref<16x16xf32, #tpu.memory_space<vmem>>, vector<16x16xf32>
    %13 = arith.mulf %9, %11 : vector<16x16xf32>
    %14 = arith.addf %12, %13 : vector<16x16xf32>
    %c0_10 = arith.constant 0 : index
    %c0_11 = arith.constant 0 : index
    %15 = vector.load %arg6[%c0_10, %c0_11] : memref<16x16xf32, #tpu.memory_space<vmem>>, vector<16x16xf32>
    tpu.vector_store %arg6[%c0_10, %c0_11], %14 {strides = array<i32>} : memref<16x16xf32, #tpu.memory_space<vmem>>, vector<16x16xf32>,
    %c0_12 = arith.constant 0 : index
    %c0_13 = arith.constant 0 : index
    %16 = vector.load %arg7[%c0_12, %c0_13] : memref<16x16xf32, #tpu.memory_space<vmem>>, vector<16x16xf32>
    %17 = arith.addf %16, %9 : vector<16x16xf32>
    %c0_14 = arith.constant 0 : index
    %c0_15 = arith.constant 0 : index
    %18 = vector.load %arg7[%c0_14, %c0_15] : memref<16x16xf32, #tpu.memory_space<vmem>>, vector<16x16xf32>
    tpu.vector_store %arg7[%c0_14, %c0_15], %17 {strides = array<i32>} : memref<16x16xf32, #tpu.memory_space<vmem>>, vector<16x16xf32>,
    %c0_16 = arith.constant 0 : index
    %c0_17 = arith.constant 0 : index
    %19 = vector.load %arg8[%c0_16, %c0_17] : memref<16x16xf32, #tpu.memory_space<vmem>>, vector<16x16xf32>
    %20 = arith.addf %19, %11 : vector<16x16xf32>
    %c0_18 = arith.constant 0 : index
    %c0_19 = arith.constant 0 : index
    %21 = vector.load %arg8[%c0_18, %c0_19] : memref<16x16xf32, #tpu.memory_space<vmem>>, vector<16x16xf32>
    tpu.vector_store %arg8[%c0_18, %c0_19], %20 {strides = array<i32>} : memref<16x16xf32, #tpu.memory_space<vmem>>, vector<16x16xf32>,
    %c0_i32_20 = arith.constant 0 : i32
    %22 = arith.cmpi eq, %arg2, %c0_i32_20 : i32
    %23 = arith.extui %22 : i1 to i32
    %c0_i32_21 = arith.constant 0 : i32
    %24 = arith.cmpi ne, %23, %c0_i32_21 : i32
    scf.if %24 {
      %c0_22 = arith.constant 0 : index
      %c0_23 = arith.constant 0 : index
      %25 = vector.load %arg6[%c0_22, %c0_23] : memref<16x16xf32, #tpu.memory_space<vmem>>, vector<16x16xf32>
      %26 = vector.shape_cast %25 : vector<16x16xf32> to vector<1x16x16xf32>
      %cst_24 = arith.constant dense<0.000000e+00> : vector<1xf32>
      %27 = vector.multi_reduction <add>, %26, %cst_24 [1, 2] : vector<1x16x16xf32> to vector<1xf32>
      %28 = vector.shape_cast %27 : vector<1xf32> to vector<1x1x1xf32>
      %29 = vector.extract %28[0, 0, 0] : f32 from vector<1x1x1xf32>
      %30 = vector.broadcast %29 : f32 to vector<1x1xf32>
      %c0_25 = arith.constant 0 : index
      %c0_26 = arith.constant 0 : index
      %31 = vector.load %arg7[%c0_25, %c0_26] : memref<16x16xf32, #tpu.memory_space<vmem>>, vector<16x16xf32>
      %32 = vector.shape_cast %31 : vector<16x16xf32> to vector<1x16x16xf32>
      %cst_27 = arith.constant dense<0.000000e+00> : vector<1xf32>
      %33 = vector.multi_reduction <add>, %32, %cst_27 [1, 2] : vector<1x16x16xf32> to vector<1xf32>
      %34 = vector.shape_cast %33 : vector<1xf32> to vector<1x1x1xf32>
      %35 = vector.extract %34[0, 0, 0] : f32 from vector<1x1x1xf32>
      %36 = vector.broadcast %35 : f32 to vector<1x1xf32>
      %c0_28 = arith.constant 0 : index
      %c0_29 = arith.constant 0 : index
      %37 = vector.load %arg8[%c0_28, %c0_29] : memref<16x16xf32, #tpu.memory_space<vmem>>, vector<16x16xf32>
      %38 = vector.shape_cast %37 : vector<16x16xf32> to vector<1x16x16xf32>
      %cst_30 = arith.constant dense<0.000000e+00> : vector<1xf32>
      %39 = vector.multi_reduction <add>, %38, %cst_30 [1, 2] : vector<1x16x16xf32> to vector<1xf32>
      %40 = vector.shape_cast %39 : vector<1xf32> to vector<1x1x1xf32>
      %41 = vector.extract %40[0, 0, 0] : f32 from vector<1x1x1xf32>
      %42 = vector.broadcast %41 : f32 to vector<1x1xf32>
      %43 = tpu.iota {dimensions = array<i32: 1>} : vector<8x128xi32>
      %44 = tpu.iota {dimensions = array<i32: 0>} : vector<8x128xi32>
      %c0_i32_31 = arith.constant 0 : i32
      %45 = vector.broadcast %c0_i32_31 : i32 to vector<8x128xi32>
      %46 = arith.cmpi eq, %44, %45 : vector<8x128xi32>
      %c0_i32_32 = arith.constant 0 : i32
      %47 = vector.broadcast %c0_i32_32 : i32 to vector<8x128xi32>
      %48 = arith.cmpi eq, %43, %47 : vector<8x128xi32>
      %49 = arith.andi %46, %48 : vector<8x128xi1>
      %cst_33 = arith.constant 0.000000e+00 : f32
      %50 = vector.shape_cast %30 : vector<1x1xf32> to vector<1x1xf32>
      %51 = vector.broadcast %50 : vector<1x1xf32> to vector<8x128xf32>
      %52 = vector.broadcast %cst_33 : f32 to vector<8x128xf32>
      %53 = arith.select %49, %51, %52 : vector<8x128xi1>, vector<8x128xf32>
      %c1_i32 = arith.constant 1 : i32
      %54 = vector.broadcast %c1_i32 : i32 to vector<8x128xi32>
      %55 = arith.cmpi eq, %43, %54 : vector<8x128xi32>
      %56 = arith.andi %46, %55 : vector<8x128xi1>
      %cst_34 = arith.constant 0.000000e+00 : f32
      %57 = vector.shape_cast %36 : vector<1x1xf32> to vector<1x1xf32>
      %58 = vector.broadcast %57 : vector<1x1xf32> to vector<8x128xf32>
      %59 = vector.broadcast %cst_34 : f32 to vector<8x128xf32>
      %60 = arith.select %56, %58, %59 : vector<8x128xi1>, vector<8x128xf32>
      %61 = arith.addf %53, %60 : vector<8x128xf32>
      %c2_i32 = arith.constant 2 : i32
      %62 = vector.broadcast %c2_i32 : i32 to vector<8x128xi32>
      %63 = arith.cmpi eq, %43, %62 : vector<8x128xi32>
      %64 = arith.andi %46, %63 : vector<8x128xi1>
      %cst_35 = arith.constant 0.000000e+00 : f32
      %65 = vector.shape_cast %42 : vector<1x1xf32> to vector<1x1xf32>
      %66 = vector.broadcast %65 : vector<1x1xf32> to vector<8x128xf32>
      %67 = vector.broadcast %cst_35 : f32 to vector<8x128xf32>
      %68 = arith.select %64, %66, %67 : vector<8x128xi1>, vector<8x128xf32>
      %69 = arith.addf %61, %68 : vector<8x128xf32>
      %c0_36 = arith.constant 0 : index
      %c0_37 = arith.constant 0 : index
      %c0_38 = arith.constant 0 : index
      %c0_39 = arith.constant 0 : index
      %70 = vector.load %arg5[%c0_36, %c0_37, %c0_38, %c0_39] : memref<1x1x8x128xf32, #tpu.memory_space<vmem>>, vector<1x1x8x128xf32>
      %71 = vector.shape_cast %70 : vector<1x1x8x128xf32> to vector<8x128xf32>
      %72 = vector.shape_cast %69 : vector<8x128xf32> to vector<1x1x8x128xf32>
      tpu.vector_store %arg5[%c0_36, %c0_37, %c0_38, %c0_39], %72 {strides = array<i32>} : memref<1x1x8x128xf32, #tpu.memory_space<vmem>>, vector<1x1x8x128xf32>,
    } else {
    }
    return
  }
  func.func @transform_0(%arg0: i32, %arg1: i32, %arg2: i32) -> (i32, i32, i32, i32) {
    %c0_i32 = arith.constant 0 : i32
    %c0_i32_0 = arith.constant 0 : i32
    return %arg0, %arg1, %arg2, %c0_i32 : i32, i32, i32, i32
  }
  func.func @transform_1(%arg0: i32, %arg1: i32, %arg2: i32) -> (i32, i32, i32, i32) {
    %c0_i32 = arith.constant 0 : i32
    %c0_i32_0 = arith.constant 0 : i32
    return %arg0, %arg1, %arg2, %c0_i32 : i32, i32, i32, i32
  }
  func.func @transform_2(%arg0: i32, %arg1: i32, %arg2: i32) -> (i32, i32, i32, i32) {
    %c0_i32 = arith.constant 0 : i32
    %c0_i32_0 = arith.constant 0 : i32
    %c0_i32_1 = arith.constant 0 : i32
    return %arg0, %arg1, %c0_i32, %c0_i32_0 : i32, i32, i32, i32
  }
}

</mosaic_0001>

<llo_original>
// kernel: tpu_custom_call.1
$region0: #{tpu_custom_call.1}
  #allocation0 [shape = 'u32[]', space=smem, size = 0x4, offset = 0x4, fixed_abs, tag = 'smem constant byte address 0x4 - core index']
  #allocation1 [shape = 'u32[144,128]{1,0:T(1,128)}', space=vmem, size = 0x12000, scoped, tag = 'internal scratch']
  #allocation2 [shape = 'f32[16,16]{1,0:T(8,128)}', space=vmem, size = 0x2000, scoped, tag = 'scratch operand']
  #allocation3 [shape = 'f32[16,16]{1,0:T(8,128)}', space=vmem, size = 0x2000, scoped, tag = 'scratch operand']
  #allocation4 [shape = 'f32[16,16]{1,0:T(8,128)}', space=vmem, size = 0x2000, scoped, tag = 'scratch operand']
  %s0 = inlined_call_operand.hbm [shape: f32[2,3,16,16], index: 0, kind: input, shape index: {}]
  %s1 = inlined_call_operand.hbm [shape: f32[2,3,16,16], index: 1, kind: input, shape index: {}]
  %s2 = inlined_call_operand.hbm [shape: f32[2,3,8,128], index: 2, kind: output, shape index: {}]
  %s3 = sld [smem:[#allocation0]]
  $region57: #{tpu_custom_call.1} parent=0
    _
  %s5 = ssub.s32 1, %s3
  %s6 = scalar_select 0, %s5, %s3
  $region1: #{tpu_custom_call.1} parent=0
    #allocation5 [shape = 'u8[16384]{0}', space=vmem, size = 0x4000, scoped, tag = 'input window, operand 0']
    #allocation6 [shape = 's32[2]{0}', space=sflag, size = 0x8, scoped, tag = 'scoped memory for tpu_custom_call.1']
    #allocation7 [shape = 's32[2]{0}', space=sflag, size = 0x8, scoped, tag = 'scoped memory for tpu_custom_call.1']
    #allocation8 [shape = 'u8[16384]{0}', space=vmem, size = 0x4000, scoped, tag = 'input window, operand 1']
    #allocation9 [shape = 's32[2]{0}', space=sflag, size = 0x8, scoped, tag = 'scoped memory for tpu_custom_call.1']
    #allocation10 [shape = 'u8[8192]{0}', space=vmem, size = 0x2000, scoped, tag = 'output window, operand 0']
    %7 = vsyncpa [#allocation6], 0
    %s8 = scalar_lea.sflag [#allocation6], 1
    %9 = vsyncpa %s8, 0
    %10 = vsyncpa [#allocation9], 0
    %s11 = scalar_lea.sflag [#allocation9], 1
    %12 = vsyncpa %s11, 0
    %13 = vsyncpa [#allocation7], 0
    %s14 = scalar_lea.sflag [#allocation7], 1
    %15 = vsyncpa %s14, 0
    loop: start=0, step=1, limit=8
    $region2: #{tpu_custom_call.1} parent=1 // loop_pre_header
      _
    $region3: #{tpu_custom_call.1} parent=1 // loop_header
      %s17 = sphi 0, %s21
      %p18 = scmp.ge.s32.totalorder %s17, 8
      %s24 = sphi 0, %s43
      %s25 = sphi 0, %s39
      %s26 = sphi 0, %s35
      %s27 = sphi 0, %s24
      %s28 = sphi 0, %s25
      %s29 = sphi 0, %s26
      %s30 = sphi 0, %s27
      %s31 = sphi 0, %s28
      %s32 = sphi 0, %s29
      %s50 = sphi 0, %s52
      %s53 = sphi 0, %s50
      %s54 = sphi 0, %s53
      %s70 = sphi 0, %s54
      %s80 = sphi 0, %s82
      %s83 = sphi 0, %s80
      %s84 = sphi 0, %s83
      %s100 = sphi 0, %s84
      %s108 = sphi 0, %s110
      %s111 = sphi 0, %s108
      %s112 = sphi 0, %s111
      %s128 = sphi 0, %s112
    $region4: #{tpu_custom_call.1} parent=1 // loop_header_branch
      %20 = sbr.rel (%p18) target = $region8
    $region5: #{tpu_custom_call.1} parent=1 // loop_body
      %s22 = ssub.s32 %s17, 1
      %s23 = ssub.s32 %s17, 2
      %s33 = sadd.s32 1, %s26
      %p34 = scmp.ge.s32.totalorder %s33, 1
      %s35 = scalar_select %p34, 0, %s33
      %s36 = sadd.s32 1, %s25
      %s37 = scalar_select %p34, %s36, %s25
      %p38 = scmp.ge.s32.totalorder %s37, 3
      %s39 = scalar_select %p38, 0, %s37
      %s40 = sadd.s32 1, %s24
      %s41 = scalar_select %p38, %s40, %s24
      %p42 = scmp.ge.s32.totalorder %s41, 2
      %s43 = scalar_select %p42, 0, %s41
      %s44 = ssub.s32 %s24, %s43
      %s45 = ssub.s32 %s25, %s39
      %s46 = sor.u32 %s44, %s45
      %s47 = ssub.s32 %s26, %s35
      %s48 = sor.u32 %s46, %s47
      %p49 = scmp.eq.s32.totalorder %s48, 0
      %s51 = sadd.s32 %s50, 1
      %s52 = scalar_select %p49, %s50, %s51
      %p55 = pneg %p49
      %p56 = scmp.eq.s32.totalorder %s17, 5
      %p57 = por %p55, %p56
      %p58 = scmp.ne.s32.totalorder %s50, %s53
      %p59 = scmp.eq.s32.totalorder %s17, 0
      %p60 = por %p58, %p59
      %p61 = scmp.ne.s32.totalorder %s50, %s53
      %p62 = scmp.eq.s32.totalorder %s22, 5
      %p63 = por %p61, %p62
      %p64 = scmp.ne.s32.totalorder %s53, %s54
      %p65 = scmp.eq.s32.totalorder %s22, 0
      %p66 = por %p64, %p65
      %p67 = scmp.ne.s32.totalorder %s53, %s54
      %p68 = scmp.eq.s32.totalorder %s23, 5
      %p69 = por %p67, %p68
      %p71 = scmp.ne.s32.totalorder %s54, %s70
      %p72 = scmp.eq.s32.totalorder %s23, 0
      %p73 = por %p71, %p72
      %s74 = ssub.s32 %s24, %s43
      %s75 = ssub.s32 %s25, %s39
      %s76 = sor.u32 %s74, %s75
      %s77 = ssub.s32 %s26, %s35
      %s78 = sor.u32 %s76, %s77
      %p79 = scmp.eq.s32.totalorder %s78, 0
      %s81 = sadd.s32 %s80, 1
      %s82 = scalar_select %p79, %s80, %s81
      %p85 = pneg %p79
      %p86 = scmp.eq.s32.totalorder %s17, 5
      %p87 = por %p85, %p86
      %p88 = scmp.ne.s32.totalorder %s80, %s83
      %p89 = scmp.eq.s32.totalorder %s17, 0
      %p90 = por %p88, %p89
      %p91 = scmp.ne.s32.totalorder %s80, %s83
      %p92 = scmp.eq.s32.totalorder %s22, 5
      %p93 = por %p91, %p92
      %p94 = scmp.ne.s32.totalorder %s83, %s84
      %p95 = scmp.eq.s32.totalorder %s22, 0
      %p96 = por %p94, %p95
      %p97 = scmp.ne.s32.totalorder %s83, %s84
      %p98 = scmp.eq.s32.totalorder %s23, 5
      %p99 = por %p97, %p98
      %p101 = scmp.ne.s32.totalorder %s84, %s100
      %p102 = scmp.eq.s32.totalorder %s23, 0
      %p103 = por %p101, %p102
      %s104 = ssub.s32 %s24, %s43
      %s105 = ssub.s32 %s25, %s39
      %s106 = sor.u32 %s104, %s105
      %p107 = scmp.eq.s32.totalorder %s106, 0
      %s109 = sadd.s32 %s108, 1
      %s110 = scalar_select %p107, %s108, %s109
      %p113 = pneg %p107
      %p114 = scmp.eq.s32.totalorder %s17, 5
      %p115 = por %p113, %p114
      %p116 = scmp.ne.s32.totalorder %s108, %s111
      %p117 = scmp.eq.s32.totalorder %s17, 0
      %p118 = por %p116, %p117
      %p119 = scmp.ne.s32.totalorder %s108, %s111
      %p120 = scmp.eq.s32.totalorder %s22, 5
      %p121 = por %p119, %p120
      %p122 = scmp.ne.s32.totalorder %s111, %s112
      %p123 = scmp.eq.s32.totalorder %s22, 0
      %p124 = por %p122, %p123
      %p125 = scmp.ne.s32.totalorder %s111, %s112
      %p126 = scmp.eq.s32.totalorder %s23, 5
      %p127 = por %p125, %p126
      %p129 = scmp.ne.s32.totalorder %s112, %s128
      %p130 = scmp.eq.s32.totalorder %s23, 0
      %p131 = por %p129, %p130
      %p132 = scmp.le.s32.totalorder 1, %s17
      %p133 = scmp.lt.s32.totalorder %s17, 7
      %p134 = pnand %p132, %p133
      %p135 = pneg %p134
      // Predicated region
      $region9: #{tpu_custom_call.1} parent=5 // pred_check
        _
      $region10: #{tpu_custom_call.1} parent=5 // pred_check_branch
        %137 = sbr.rel (%p134) target = $region12
      $region11: #{tpu_custom_call.1} parent=5 // pred_region
        %s138 = ssub.s32 %s17, 1
      $region12: #{tpu_custom_call.1} parent=5 // pred_fallthru
        _
      %p139 = scmp.lt.s32.totalorder %s17, 6
      // Predicated region
      $region13: #{tpu_custom_call.1} parent=5 // pred_check
        %p140 = pneg %p139
      $region14: #{tpu_custom_call.1} parent=5 // pred_check_branch
        %142 = sbr.rel (%p140) target = $region16
      $region15: #{tpu_custom_call.1} parent=5 // pred_region
        // Predicated region
        $region17: #{tpu_custom_call.1} parent=15 // pred_check
          %p143 = pneg %p60
        $region18: #{tpu_custom_call.1} parent=15 // pred_check_branch
          %145 = sbr.rel (%p143) target = $region20
        $region19: #{tpu_custom_call.1} parent=15 // pred_region
          %s146 = sand.u32 %s50, 1
          %s147 = scalar_lea.sflag [#allocation6], %s146
          %s148 = sand.u32 %s50, 1
          %s149 = smul.addr %s148, 16
          %s150 = scalar_lea.vmem [#allocation5], %s149
          %s151 = smul.u32 2, %s26
          %s153 = ssub.s32 256, 256
          %154 = vsyncadd %s147, %s153
          %s155 = smul.addr %s25, 2
          %s156 = sadd.s32 %s151, %s155
          %s157 = smul.addr %s24, 6
          %s158 = sadd.s32 %s156, %s157
          %s159 = smul.addr %s158, 128
          %s160 = scalar_lea.hbm %s0, %s159
          %s161 = sshll.u32 %s150, 4
          %s162 = int_to_ptr.vmem [resolvable:$true] %s161
          %167 = dma.hbm_to_vmem [thread:$0]  %s160, 256, %s162, %s147, 128, 128, 8
        $region20: #{tpu_custom_call.1} parent=15 // pred_fallthru
          _
        // Predicated region
        $region21: #{tpu_custom_call.1} parent=15 // pred_check
          %p168 = pneg %p90
        $region22: #{tpu_custom_call.1} parent=15 // pred_check_branch
          %170 = sbr.rel (%p168) target = $region24
        $region23: #{tpu_custom_call.1} parent=15 // pred_region
          %s171 = sand.u32 %s80, 1
          %s172 = scalar_lea.sflag [#allocation9], %s171
          %s173 = sand.u32 %s80, 1
          %s174 = smul.addr %s173, 16
          %s175 = scalar_lea.vmem [#allocation8], %s174
          %s176 = smul.u32 2, %s26
          %s178 = ssub.s32 256, 256
          %179 = vsyncadd %s172, %s178
          %s180 = smul.addr %s25, 2
          %s181 = sadd.s32 %s176, %s180
          %s182 = smul.addr %s24, 6
          %s183 = sadd.s32 %s181, %s182
          %s184 = smul.addr %s183, 128
          %s185 = scalar_lea.hbm %s1, %s184
          %s186 = sshll.u32 %s175, 4
          %s187 = int_to_ptr.vmem [resolvable:$true] %s186
          %192 = dma.hbm_to_vmem [thread:$0]  %s185, 256, %s187, %s172, 128, 128, 8
        $region24: #{tpu_custom_call.1} parent=15 // pred_fallthru
          _
      $region16: #{tpu_custom_call.1} parent=5 // pred_fallthru
        _
      %p193 = scmp.le.s32.totalorder 1, %s17
      %p194 = scmp.lt.s32.totalorder %s17, 7
      %p195 = pnand %p193, %p194
      %p196 = pneg %p195
      // Predicated region
      $region25: #{tpu_custom_call.1} parent=5 // pred_check
        _
      $region26: #{tpu_custom_call.1} parent=5 // pred_check_branch
        %198 = sbr.rel (%p195) target = $region28
      $region27: #{tpu_custom_call.1} parent=5 // pred_region
        %s199 = ssub.s32 %s17, 1
        %s200 = sand.u32 %s53, 1
        %s201 = scalar_lea.sflag [#allocation6], %s200
        %s202 = sand.u32 %s53, 1
        %s203 = smul.addr %s202, 16
        %s204 = scalar_lea.vmem [#allocation5], %s203
        // Predicated region
        $region29: #{tpu_custom_call.1} parent=27 // pred_check
          %p205 = pneg %p66
        $region30: #{tpu_custom_call.1} parent=27 // pred_check_branch
          %207 = sbr.rel (%p205) target = $region32
        $region31: #{tpu_custom_call.1} parent=27 // pred_region
          %208 = dma.done %s201, 256
        $region32: #{tpu_custom_call.1} parent=27 // pred_fallthru
          _
        %s209 = sand.u32 %s83, 1
        %s210 = scalar_lea.sflag [#allocation9], %s209
        %s211 = sand.u32 %s83, 1
        %s212 = smul.addr %s211, 16
        %s213 = scalar_lea.vmem [#allocation8], %s212
        // Predicated region
        $region33: #{tpu_custom_call.1} parent=27 // pred_check
          %p214 = pneg %p96
        $region34: #{tpu_custom_call.1} parent=27 // pred_check_branch
          %216 = sbr.rel (%p214) target = $region36
        $region35: #{tpu_custom_call.1} parent=27 // pred_region
          %217 = dma.done %s210, 256
        $region36: #{tpu_custom_call.1} parent=27 // pred_fallthru
          _
        %s218 = sand.u32 %s53, 1
        %s219 = scalar_lea.sflag [#allocation6], %s218
        %s220 = sand.u32 %s53, 1
        %s221 = smul.addr %s220, 16
        %s222 = scalar_lea.vmem [#allocation5], %s221
        %p223 = pneg %p66
        %p224 = pneg %p63
        %s225 = sand.u32 %s83, 1
        %s226 = scalar_lea.sflag [#allocation9], %s225
        %s227 = sand.u32 %s83, 1
        %s228 = smul.addr %s227, 16
        %s229 = scalar_lea.vmem [#allocation8], %s228
        %p230 = pneg %p96
        %p231 = pneg %p93
        %p232 = pneg %p124
        %p233 = pneg %p121
        %s234 = sand.u32 %s111, 1
        %s235 = scalar_lea.sflag [#allocation7], %s234
        %s236 = sand.u32 %s111, 1
        %s237 = smul.addr %s236, 8
        %s238 = scalar_lea.vmem [#allocation10], %s237
        %s239 = smul.u32 2, %s29
        %s240 = smul.u32 2, %s29
        %p241 = scmp.eq.s32.totalorder %s29, 0
        // Predicated region
        $region37: #{tpu_custom_call.1} parent=27 // pred_check
          %p242 = pneg %p241
        $region38: #{tpu_custom_call.1} parent=27 // pred_check_branch
          %244 = sbr.rel (%p242) target = $region40
        $region39: #{tpu_custom_call.1} parent=27 // pred_region
          %vm245 = vcmask 130048
          %246 = vst.msk [vmem:[#allocation2] sm:$0xff] %vm245, 0.0
          %247 = vst.msk [vmem:[#allocation2 + $0x8] sm:$0xff] %vm245, 0.0
          %248 = vst.msk [vmem:[#allocation3] sm:$0xff] %vm245, 0.0
          %249 = vst.msk [vmem:[#allocation3 + $0x8] sm:$0xff] %vm245, 0.0
          %250 = vst.msk [vmem:[#allocation4] sm:$0xff] %vm245, 0.0
          %251 = vst.msk [vmem:[#allocation4 + $0x8] sm:$0xff] %vm245, 0.0
        $region40: #{tpu_custom_call.1} parent=27 // pred_fallthru
          _
        %v252 = vld [vmem:[%s204] sm:$0xff]
        %v253 = vld [vmem:[%s204 + $0x8] sm:$0xff]
        %v254 = vxor.u32 %v252, 2147483648
        %v255 = vxor.u32 %v253, 2147483648
        %v256 = vmul.f32 %v254, 1.442695
        %v257 = vpow.pop %v256
        %v258 = vmul.f32 %v255, 1.442695
        %v259 = vpow.pop %v258
        %v260 = vadd.f32 %v257, 1.0
        %v261 = vadd.f32 %v259, 1.0
        %v262 = vrcp.pop %v260
        %v263 = vmul.f32 1.0, %v262
        %v264 = vrcp.pop %v261
        %v265 = vmul.f32 1.0, %v264
        %v266 = vld [vmem:[%s213] sm:$0xff]
        %v267 = vld [vmem:[%s213 + $0x8] sm:$0xff]
        %v268 = vld [vmem:[#allocation2] sm:$0xff]
        %v269 = vld [vmem:[#allocation2 + $0x8] sm:$0xff]
        %v270 = vmul.f32 %v263, %v266
        %v271 = vmul.f32 %v265, %v267
        %v272 = vadd.f32 %v268, %v270
        %v273 = vadd.f32 %v269, %v271
        %vm274 = vcmask 130048
        %275 = vst.msk [vmem:[#allocation2] sm:$0xff] %vm274, %v272
        %276 = vst.msk [vmem:[#allocation2 + $0x8] sm:$0xff] %vm274, %v273
        %v277 = vld [vmem:[#allocation3] sm:$0xff]
        %v278 = vld [vmem:[#allocation3 + $0x8] sm:$0xff]
        %v279 = vadd.f32 %v277, %v263
        %v280 = vadd.f32 %v278, %v265
        %281 = vst.msk [vmem:[#allocation3] sm:$0xff] %vm274, %v279
        %282 = vst.msk [vmem:[#allocation3 + $0x8] sm:$0xff] %vm274, %v280
        %v283 = vld [vmem:[#allocation4] sm:$0xff]
        %v284 = vld [vmem:[#allocation4 + $0x8] sm:$0xff]
        %v285 = vadd.f32 %v283, %v266
        %v286 = vadd.f32 %v284, %v267
        %287 = vst.msk [vmem:[#allocation4] sm:$0xff] %vm274, %v285
        %288 = vst.msk [vmem:[#allocation4 + $0x8] sm:$0xff] %vm274, %v286
        // Predicated region
        $region41: #{tpu_custom_call.1} parent=27 // pred_check
          %p289 = pneg %p241
        $region42: #{tpu_custom_call.1} parent=27 // pred_check_branch
          %291 = sbr.rel (%p289) target = $region44
        $region43: #{tpu_custom_call.1} parent=27 // pred_region
          %v292 = vld [vmem:[#allocation2] sm:$0xff]
          %v293 = vld [vmem:[#allocation2 + $0x8] sm:$0xff]
          %v294 = vsel %vm274, %v292, 0.0
          %v295 = vsel %vm274, %v293, 0.0
          %v296 = vadd.f32 %v294, %v295
          %297 = vadd.xlane.f32.xlu0 %v296
          %v298 = vpop.xlane.xlu0 %297
          %v299 = vrot.slane %v298, 4
          %v300 = vadd.f32 %v298, %v299
          %v301 = vrot.slane %v300, 2
          %v302 = vadd.f32 %v300, %v301
          %v303 = vrot.slane %v302, 1
          %v304 = vadd.f32 %v302, %v303
          %s305 = vtos %v304
          %v306 = vld [vmem:[#allocation3] sm:$0xff]
          %v307 = vld [vmem:[#allocation3 + $0x8] sm:$0xff]
          %v308 = vsel %vm274, %v306, 0.0
          %v309 = vsel %vm274, %v307, 0.0
          %v310 = vadd.f32 %v308, %v309
          %311 = vadd.xlane.f32.xlu0 %v310
          %v312 = vpop.xlane.xlu0 %311
          %v313 = vrot.slane %v312, 4
          %v314 = vadd.f32 %v312, %v313
          %v315 = vrot.slane %v314, 2
          %v316 = vadd.f32 %v314, %v315
          %v317 = vrot.slane %v316, 1
          %v318 = vadd.f32 %v316, %v317
          %s319 = vtos %v318
          %v320 = vld [vmem:[#allocation4] sm:$0xff]
          %v321 = vld [vmem:[#allocation4 + $0x8] sm:$0xff]
          %v322 = vsel %vm274, %v320, 0.0
          %v323 = vsel %vm274, %v321, 0.0
          %v324 = vadd.f32 %v322, %v323
          %325 = vadd.xlane.f32.xlu0 %v324
          %v326 = vpop.xlane.xlu0 %325
          %v327 = vrot.slane %v326, 4
          %v328 = vadd.f32 %v326, %v327
          %v329 = vrot.slane %v328, 2
          %v330 = vadd.f32 %v328, %v329
          %v331 = vrot.slane %v330, 1
          %v332 = vadd.f32 %v330, %v331
          %s333 = vtos %v332
          %v334 = vlaneseq
          %v335 = vand.u32 %v334, 127
          %v336 = vlaneseq
          %v337 = vshrl.u32 %v336, 7
          %vm338 = vcmp.eq.s32.totalorder %v337, 0
          %vm339 = vcmp.eq.s32.totalorder %v335, 0
          %vm340 = vmand %vm338, %vm339
          %v341 = vstv %s305
          %v342 = vsel %vm340, %v341, 0.0
          %vm343 = vcmp.eq.s32.totalorder %v335, 1
          %vm344 = vmand %vm338, %vm343
          %v345 = vstv %s319
          %v346 = vsel %vm344, %v345, 0.0
          %v347 = vadd.f32 %v342, %v346
          %vm348 = vcmp.eq.s32.totalorder %v335, 2
          %vm349 = vmand %vm338, %vm348
          %v350 = vstv %s333
          %v351 = vsel %vm349, %v350, 0.0
          %v352 = vadd.f32 %v347, %v351
          %353 = vst [vmem:[%s238] sm:$0xff] %v352
        $region44: #{tpu_custom_call.1} parent=27 // pred_fallthru
          _
        %s354 = sand.u32 %s111, 1
        %s355 = scalar_lea.sflag [#allocation7], %s354
        %s356 = sand.u32 %s111, 1
        %s357 = smul.addr %s356, 8
        %s358 = scalar_lea.vmem [#allocation10], %s357
        // Predicated region
        $region45: #{tpu_custom_call.1} parent=27 // pred_check
          %p359 = pneg %p121
        $region46: #{tpu_custom_call.1} parent=27 // pred_check_branch
          %361 = sbr.rel (%p359) target = $region48
        $region47: #{tpu_custom_call.1} parent=27 // pred_region
          %s363 = ssub.s32 128, 128
          %364 = vsyncadd %s355, %s363
          %s365 = smul.addr %s27, 3
          %s366 = sadd.s32 %s28, %s365
          %s367 = smul.addr %s366, 128
          %s368 = scalar_lea.hbm %s2, %s367
          %s370 = sshll.u32 %s358, 4
          %s371 = int_to_ptr.vmem [resolvable:$true] %s370
          %373 = dma.vmem_to_hbm [thread:$0]  %s371, 128, %s368, %s355
        $region48: #{tpu_custom_call.1} parent=27 // pred_fallthru
          _
      $region28: #{tpu_custom_call.1} parent=5 // pred_fallthru
        _
      %p374 = scmp.le.s32.totalorder 2, %s17
      // Predicated region
      $region49: #{tpu_custom_call.1} parent=5 // pred_check
        %p375 = pneg %p374
      $region50: #{tpu_custom_call.1} parent=5 // pred_check_branch
        %377 = sbr.rel (%p375) target = $region52
      $region51: #{tpu_custom_call.1} parent=5 // pred_region
        %s378 = ssub.s32 %s17, 2
        // Predicated region
        $region53: #{tpu_custom_call.1} parent=51 // pred_check
          %p379 = pneg %p127
        $region54: #{tpu_custom_call.1} parent=51 // pred_check_branch
          %381 = sbr.rel (%p379) target = $region56
        $region55: #{tpu_custom_call.1} parent=51 // pred_region
          %s382 = sand.u32 %s112, 1
          %s383 = scalar_lea.sflag [#allocation7], %s382
          %s384 = sand.u32 %s112, 1
          %s385 = smul.addr %s384, 8
          %s386 = scalar_lea.vmem [#allocation10], %s385
          %387 = dma.done %s383, 128
        $region56: #{tpu_custom_call.1} parent=51 // pred_fallthru
          _
      $region52: #{tpu_custom_call.1} parent=5 // pred_fallthru
        _
    $region6: #{tpu_custom_call.1} parent=1 // loop_footer
      %s21 = sadd.s32 1, %s17
    $region7: #{tpu_custom_call.1} parent=1 // loop_footer_branch
      %16 = sbr.rel target = $region3
    $region8: #{tpu_custom_call.1} parent=1 // loop_exit
      _
    %388 = vsyncpa [#allocation6], 1
    %s389 = scalar_lea.sflag [#allocation6], 1
    %390 = vsyncpa %s389, 1
    %391 = vsyncpa [#allocation9], 1
    %s392 = scalar_lea.sflag [#allocation9], 1
    %393 = vsyncpa %s392, 1
    %394 = vsyncpa [#allocation7], 1
    %s395 = scalar_lea.sflag [#allocation7], 1
    %396 = vsyncpa %s395, 1

</llo_original>
